<compile_context>
chip_gen: v5e
topology: v5e:2x2
jax: 0.10.0
libtpu: 0.0.40
codegen_flags: <defaults>
</compile_context>

<pallas_src>
import functools

import jax
import jax.numpy as jnp
from jax.experimental import pallas as pl
from jax.experimental.pallas import tpu as pltpu


def _round_up(x, m):
    return ((x + m - 1) // m) * m


def _criterion_kernel(d_ref, gt_ref, out_ref, acc_ref, *, n_valid, neg_j):
    # d_ref  : (TB, C) native dtype in VMEM (batch tile of distances)
    # gt_ref : (TB, 1) int32 in VMEM (batch tile of ground-truth class ids)
    # out_ref: (1, 1)  f32 in VMEM (written only at the last grid step)
    # acc_ref: (1, 1)  f32 VMEM scratch accumulator (persists across grid steps)
    i = pl.program_id(0)

    @pl.when(i == 0)
    def _():
        acc_ref[...] = jnp.zeros_like(acc_ref)

    d = d_ref[...].astype(jnp.float32)            # cast in-kernel; ship native dtype
    gt = gt_ref[...]                              # (TB, 1) int32
    tb, c = d.shape

    # Rows past the true batch size (partial last tile) are invalid.
    row_ids = i * tb + jax.lax.broadcasted_iota(jnp.int32, (tb, 1), 0)
    valid = row_ids < n_valid                     # (TB, 1) bool
    # Sanitize invalid rows so boundary-block garbage never reaches exp/log.
    d = jnp.where(valid, d, 0.0)                  # (TB, C)

    # Gather distances[r, gt[r]] via iota-compare + select + lane reduce.
    col_ids = jax.lax.broadcasted_iota(jnp.int32, (tb, c), 1)
    true_y = jnp.sum(jnp.where(col_ids == gt, d, 0.0), axis=1, keepdims=True)  # (TB,1)

    # Stabilized log(exp(-j) + sum_c exp(-d_c)):
    #   m = max(max_c(-d_c), -j);  log_term = m + log(exp(-j - m) + sum_c exp(-d_c - m))
    neg_d = -d
    m = jnp.maximum(jnp.max(neg_d, axis=1, keepdims=True), neg_j)              # (TB,1)
    sum_exp = jnp.sum(jnp.exp(neg_d - m), axis=1, keepdims=True)               # (TB,1)
    log_term = m + jnp.log(jnp.exp(neg_j - m) + sum_exp)                       # (TB,1)

    per_sample = jnp.where(valid, true_y + log_term, 0.0)                      # (TB,1)
    acc_ref[...] = acc_ref[...] + jnp.sum(per_sample, axis=0, keepdims=True)

    @pl.when(i == pl.num_programs(0) - 1)
    def _():
        out_ref[...] = acc_ref[...] * jnp.float32(1.0 / n_valid)


def criterion(distances, ground_truths, j=0.3, block_rows=None):
    """Pallas equivalent of Criterion.forward. Returns a scalar f32 loss."""
    B, C = distances.shape
    if ground_truths.ndim == 1:
        ground_truths = ground_truths[:, None]
    ground_truths = ground_truths.astype(jnp.int32)
    # NOTE: no up-cast / padding of `distances` here — the kernel casts the tile
    # to f32 and masks any partial last tile itself.

    itemsize = jnp.dtype(distances.dtype).itemsize
    if block_rows is None:
        # Target <= ~4 MiB per (TB, C) input buffer so 2-deep pipelining stays
        # comfortably inside every chip's scoped-VMEM budget.
        cap = (4 * 1024 * 1024) // max(1, C * itemsize)
        cap = max(8, (cap // 8) * 8)
        block_rows = int(min(512, cap, _round_up(B, 8)))
    tb = int(block_rows)

    grid_steps = pl.cdiv(B, tb)

    kernel = functools.partial(_criterion_kernel, n_valid=B, neg_j=-float(j))

    out = pl.pallas_call(
        kernel,
        out_shape=jax.ShapeDtypeStruct((1, 1), jnp.float32),
        grid=(grid_steps,),
        in_specs=[
            pl.BlockSpec((tb, C), lambda i: (i, 0)),   # distances batch tile
            pl.BlockSpec((tb, 1), lambda i: (i, 0)),   # ground-truth indices tile
        ],
        out_specs=pl.BlockSpec((1, 1), lambda i: (0, 0)),   # resident scalar output
        scratch_shapes=[pltpu.VMEM((1, 1), jnp.float32)],
        compiler_params=pltpu.CompilerParams(
            dimension_semantics=("arbitrary",),   # reduction axis (accumulator)
            vmem_limit_bytes=32 * 1024 * 1024,
        ),
    )(distances, ground_truths)
    return out[0, 0]


def _criterion_ref(distances, ground_truths, j=0.3):
    # Pure-JAX reference mirroring the PyTorch code.
    if ground_truths.ndim == 1:
        ground_truths = ground_truths[:, None]
    d = distances.astype(jnp.float32)
    true_y = d[jnp.arange(ground_truths.shape[0]), ground_truths[:, 0]]
    sum_exp_neg = jnp.sum(jnp.exp(-d), axis=1)
    log_term = jnp.log(jnp.exp(-jnp.float32(j)) + sum_exp_neg)
    return jnp.mean(true_y + log_term)


if __name__ == "__main__":
    key = jax.random.PRNGKey(0)
    kd, kg = jax.random.split(key)

    B, C = 20, 16  # small shapes; B chosen so the last tile has padded rows
    distances = jax.random.uniform(kd, (B, C), dtype=jnp.float32) * 3.0
    ground_truths = jax.random.randint(kg, (B,), 0, C, dtype=jnp.int32)

    # Force several grid steps (TB=8 -> 3 tiles, last one partial) to exercise
    # the pipelined accumulator + boundary-mask path.
    loss = criterion(distances, ground_truths, j=0.3, block_rows=8)
    jax.block_until_ready(loss)
    ref = _criterion_ref(distances, ground_truths, j=0.3)
    assert jnp.allclose(loss, ref, atol=1e-5, rtol=1e-5), (loss, ref)

    # Native-dtype path: ship bf16 over HBM, cast to f32 inside the kernel
    # (also exercises the auto tile-size path with a single partial block).
    d_bf16 = distances.astype(jnp.bfloat16)
    loss_bf = criterion(d_bf16, ground_truths, j=0.3)
    jax.block_until_ready(loss_bf)
    ref_bf = _criterion_ref(d_bf16.astype(jnp.float32), ground_truths, j=0.3)
    assert jnp.allclose(loss_bf, ref_bf, atol=1e-3, rtol=1e-3), (loss_bf, ref_bf)

    print("KERNEL_OK")
</pallas_src>

<mosaic_0001>
module attributes {stable_mosaic.version = 11 : i64} {
  func.func @_criterion_kernel(%arg0: i32, %arg1: memref<8x16xf32, #tpu.memory_space<vmem>>, %arg2: memref<8x1xi32, #tpu.memory_space<vmem>>, %arg3: memref<1x1xf32, #tpu.memory_space<vmem>>, %arg4: memref<1x1xf32, #tpu.memory_space<vmem>>) attributes {dimension_semantics = [#tpu.dimension_semantics<arbitrary>], iteration_bounds = array<i64: 3>, scalar_prefetch = 0 : i64, scratch_operands = 1 : i64, tpu.core_type = #tpu.core_type<tc>, window_params = [{transform_indices = @transform_0, window_bounds = array<i64: 8, 16>}, {transform_indices = @transform_1, window_bounds = array<i64: 8, 1>}, {pipeline_mode = #tpu.pipeline_mode<synchronous>, transform_indices = @transform_2, window_bounds = array<i64: 1, 1>}]} {
    %c0_i32 = arith.constant 0 : i32
    %0 = arith.cmpi eq, %arg0, %c0_i32 : i32
    %1 = arith.extui %0 : i1 to i32
    %c0_i32_0 = arith.constant 0 : i32
    %2 = arith.cmpi ne, %1, %c0_i32_0 : i32
    scf.if %2 {
      %cst_18 = arith.constant 0.000000e+00 : f32
      %50 = vector.broadcast %cst_18 : f32 to vector<1x1xf32>
      %c0_19 = arith.constant 0 : index
      %c0_20 = arith.constant 0 : index
      %51 = vector.load %arg4[%c0_19, %c0_20] : memref<1x1xf32, #tpu.memory_space<vmem>>, vector<1x1xf32>
      tpu.vector_store %arg4[%c0_19, %c0_20], %50 {strides = array<i32>} : memref<1x1xf32, #tpu.memory_space<vmem>>, vector<1x1xf32>,
    } else {
    }
    %c0 = arith.constant 0 : index
    %c0_1 = arith.constant 0 : index
    %3 = vector.load %arg1[%c0, %c0_1] : memref<8x16xf32, #tpu.memory_space<vmem>>, vector<8x16xf32>
    %c0_2 = arith.constant 0 : index
    %c0_3 = arith.constant 0 : index
    %4 = vector.load %arg2[%c0_2, %c0_3] : memref<8x1xi32, #tpu.memory_space<vmem>>, vector<8x1xi32>
    %c8_i32 = arith.constant 8 : i32
    %5 = arith.muli %arg0, %c8_i32 : i32
    %6 = tpu.iota {dimensions = array<i32: 0>} : vector<8x1xi32>
    %7 = vector.broadcast %5 : i32 to vector<8x1xi32>
    %8 = arith.addi %7, %6 : vector<8x1xi32>
    %c20_i32 = arith.constant 20 : i32
    %9 = vector.broadcast %c20_i32 : i32 to vector<8x1xi32>
    %10 = arith.cmpi slt, %8, %9 : vector<8x1xi32>
    %cst = arith.constant 0.000000e+00 : f32
    %11 = vector.shape_cast %10 : vector<8x1xi1> to vector<8x1xi1>
    %12 = vector.broadcast %11 : vector<8x1xi1> to vector<8x16xi1>
    %13 = vector.broadcast %cst : f32 to vector<8x16xf32>
    %14 = arith.select %12, %3, %13 : vector<8x16xi1>, vector<8x16xf32>
    %15 = tpu.iota {dimensions = array<i32: 1>} : vector<8x16xi32>
    %16 = vector.broadcast %4 : vector<8x1xi32> to vector<8x16xi32>
    %17 = arith.cmpi eq, %15, %16 : vector<8x16xi32>
    %cst_4 = arith.constant 0.000000e+00 : f32
    %18 = vector.broadcast %cst_4 : f32 to vector<8x16xf32>
    %19 = arith.select %17, %14, %18 : vector<8x16xi1>, vector<8x16xf32>
    %cst_5 = arith.constant dense<0.000000e+00> : vector<8xf32>
    %20 = vector.multi_reduction <add>, %19, %cst_5 [1] : vector<8x16xf32> to vector<8xf32>
    %21 = vector.shape_cast %20 : vector<8xf32> to vector<8x1xf32>
    %cst_6 = arith.constant 0.000000e+00 : f32
    %22 = vector.broadcast %cst_6 : f32 to vector<8x16xf32>
    %23 = arith.subf %22, %14 : vector<8x16xf32>
    %cst_7 = arith.constant dense<0xFF800000> : vector<8xf32>
    %24 = vector.multi_reduction <maximumf>, %23, %cst_7 [1] : vector<8x16xf32> to vector<8xf32>
    %25 = vector.shape_cast %24 : vector<8xf32> to vector<8x1xf32>
    %cst_8 = arith.constant -3.000000e-01 : f32
    %26 = vector.broadcast %cst_8 : f32 to vector<8x1xf32>
    %27 = arith.maximumf %25, %26 : vector<8x1xf32>
    %28 = vector.broadcast %27 : vector<8x1xf32> to vector<8x16xf32>
    %29 = arith.subf %23, %28 : vector<8x16xf32>
    %30 = math.exp %29 : vector<8x16xf32>
    %cst_9 = arith.constant dense<0.000000e+00> : vector<8xf32>
    %31 = vector.multi_reduction <add>, %30, %cst_9 [1] : vector<8x16xf32> to vector<8xf32>
    %32 = vector.shape_cast %31 : vector<8xf32> to vector<8x1xf32>
    %cst_10 = arith.constant -3.000000e-01 : f32
    %33 = vector.broadcast %cst_10 : f32 to vector<8x1xf32>
    %34 = arith.subf %33, %27 : vector<8x1xf32>
    %35 = math.exp %34 : vector<8x1xf32>
    %36 = arith.addf %35, %32 : vector<8x1xf32>
    %37 = math.log %36 : vector<8x1xf32>
    %38 = arith.addf %27, %37 : vector<8x1xf32>
    %39 = arith.addf %21, %38 : vector<8x1xf32>
    %cst_11 = arith.constant 0.000000e+00 : f32
    %40 = vector.broadcast %cst_11 : f32 to vector<8x1xf32>
    %41 = arith.select %10, %39, %40 : vector<8x1xi1>, vector<8x1xf32>
    %c0_12 = arith.constant 0 : index
    %c0_13 = arith.constant 0 : index
    %42 = vector.load %arg4[%c0_12, %c0_13] : memref<1x1xf32, #tpu.memory_space<vmem>>, vector<1x1xf32>
    %cst_14 = arith.constant dense<0.000000e+00> : vector<1xf32>
    %43 = vector.multi_reduction <add>, %41, %cst_14 [0] : vector<8x1xf32> to vector<1xf32>
    %44 = vector.shape_cast %43 : vector<1xf32> to vector<1x1xf32>
    %45 = arith.addf %42, %44 : vector<1x1xf32>
    %c0_15 = arith.constant 0 : index
    %c0_16 = arith.constant 0 : index
    %46 = vector.load %arg4[%c0_15, %c0_16] : memref<1x1xf32, #tpu.memory_space<vmem>>, vector<1x1xf32>
    tpu.vector_store %arg4[%c0_15, %c0_16], %45 {strides = array<i32>} : memref<1x1xf32, #tpu.memory_space<vmem>>, vector<1x1xf32>,
    %c2_i32 = arith.constant 2 : i32
    %47 = arith.cmpi eq, %arg0, %c2_i32 : i32
    %48 = arith.extui %47 : i1 to i32
    %c0_i32_17 = arith.constant 0 : i32
    %49 = arith.cmpi ne, %48, %c0_i32_17 : i32
    scf.if %49 {
      %c0_18 = arith.constant 0 : index
      %c0_19 = arith.constant 0 : index
      %50 = vector.load %arg4[%c0_18, %c0_19] : memref<1x1xf32, #tpu.memory_space<vmem>>, vector<1x1xf32>
      %cst_20 = arith.constant 5.000000e-02 : f32
      %51 = vector.broadcast %cst_20 : f32 to vector<1x1xf32>
      %52 = arith.mulf %50, %51 : vector<1x1xf32>
      %c0_21 = arith.constant 0 : index
      %c0_22 = arith.constant 0 : index
      %53 = vector.load %arg3[%c0_21, %c0_22] : memref<1x1xf32, #tpu.memory_space<vmem>>, vector<1x1xf32>
      tpu.vector_store %arg3[%c0_21, %c0_22], %52 {strides = array<i32>} : memref<1x1xf32, #tpu.memory_space<vmem>>, vector<1x1xf32>,
    } else {
    }
    return
  }
  func.func @transform_0(%arg0: i32) -> (i32, i32) {
    %c0_i32 = arith.constant 0 : i32
    %c0_i32_0 = arith.constant 0 : i32
    return %arg0, %c0_i32 : i32, i32
  }
  func.func @transform_1(%arg0: i32) -> (i32, i32) {
    %c0_i32 = arith.constant 0 : i32
    %c0_i32_0 = arith.constant 0 : i32
    return %arg0, %c0_i32 : i32, i32
  }
  func.func @transform_2(%arg0: i32) -> (i32, i32) {
    %c0_i32 = arith.constant 0 : i32
    %c0_i32_0 = arith.constant 0 : i32
    %c0_i32_1 = arith.constant 0 : i32
    return %c0_i32, %c0_i32_0 : i32, i32
  }
}

</mosaic_0001>

<llo_original>
// kernel: tpu_custom_call.1
$region0: #{tpu_custom_call.1}
  #allocation0 [shape = 'u32[]', space=smem, size = 0x4, offset = 0x4, fixed_abs, tag = 'smem constant byte address 0x4 - core index']
  #allocation1 [shape = 'u32[72,128]{1,0:T(1,128)}', space=vmem, size = 0x9000, scoped, tag = 'internal scratch']
  #allocation2 [shape = 'f32[1,1]{1,0:T(1,128)}', space=vmem, size = 0x200, scoped, tag = 'scratch operand']
  %s0 = inlined_call_operand.vmem [shape: f32[20,16], index: 0, kind: input, shape index: {}]
  %s1 = inlined_call_operand.vmem [shape: s32[20,1], index: 1, kind: input, shape index: {}]
  %s2 = inlined_call_operand.hbm [shape: f32[1,1], index: 2, kind: output, shape index: {}]
  %s3 = sld [smem:[#allocation0]]
  $region49: #{tpu_custom_call.1} parent=0
    _
  %s5 = ssub.s32 1, %s3
  %s6 = scalar_select 0, %s5, %s3
  $region1: #{tpu_custom_call.1} parent=0
    #allocation3 [shape = 'u8[512]{0}', space=vmem, size = 0x400, scoped, tag = 'output window, operand 0, single buffered']
    #allocation4 [shape = 's32[2]{0}', space=sflag, size = 0x8, scoped, tag = 'scoped memory for tpu_custom_call.1']
    %7 = vsyncpa [#allocation4], 0
    loop: start=0, step=1, limit=5
    $region2: #{tpu_custom_call.1} parent=1 // loop_pre_header
      _
    $region3: #{tpu_custom_call.1} parent=1 // loop_header
      %s9 = sphi 0, %s13
      %p10 = scmp.ge.s32.totalorder %s9, 5
      %s19 = sphi 0, %s21
      %s22 = sphi 0, %s19
      %s23 = sphi 0, %s22
      %s39 = sphi 0, %s23
      %s45 = sphi 0, %s47
      %s48 = sphi 0, %s45
      %s49 = sphi 0, %s48
      %s65 = sphi 0, %s49
      %s69 = sphi 0, %s69
      %s71 = sphi 0, %s69
      %s72 = sphi 0, %s71
      %s86 = sphi 0, %s72
    $region4: #{tpu_custom_call.1} parent=1 // loop_header_branch
      %12 = sbr.rel (%p10) target = $region8
    $region5: #{tpu_custom_call.1} parent=1 // loop_body
      %s14 = ssub.s32 %s9, 1
      %s15 = ssub.s32 %s9, 2
      %s16 = sadd.s32 %s9, 1
      %s17 = ssub.s32 %s9, %s16
      %p18 = scmp.eq.s32.totalorder %s17, 0
      %s20 = sadd.s32 %s19, 1
      %s21 = scalar_select %p18, %s19, %s20
      %p24 = pneg %p18
      %p25 = scmp.eq.s32.totalorder %s9, 2
      %p26 = por %p24, %p25
      %p27 = scmp.ne.s32.totalorder %s19, %s22
      %p28 = scmp.eq.s32.totalorder %s9, 0
      %p29 = por %p27, %p28
      %p30 = scmp.ne.s32.totalorder %s19, %s22
      %p31 = scmp.eq.s32.totalorder %s14, 2
      %p32 = por %p30, %p31
      %p33 = scmp.ne.s32.totalorder %s22, %s23
      %p34 = scmp.eq.s32.totalorder %s14, 0
      %p35 = por %p33, %p34
      %p36 = scmp.ne.s32.totalorder %s22, %s23
      %p37 = scmp.eq.s32.totalorder %s15, 2
      %p38 = por %p36, %p37
      %p40 = scmp.ne.s32.totalorder %s23, %s39
      %p41 = scmp.eq.s32.totalorder %s15, 0
      %p42 = por %p40, %p41
      %s43 = ssub.s32 %s9, %s16
      %p44 = scmp.eq.s32.totalorder %s43, 0
      %s46 = sadd.s32 %s45, 1
      %s47 = scalar_select %p44, %s45, %s46
      %p50 = pneg %p44
      %p51 = scmp.eq.s32.totalorder %s9, 2
      %p52 = por %p50, %p51
      %p53 = scmp.ne.s32.totalorder %s45, %s48
      %p54 = scmp.eq.s32.totalorder %s9, 0
      %p55 = por %p53, %p54
      %p56 = scmp.ne.s32.totalorder %s45, %s48
      %p57 = scmp.eq.s32.totalorder %s14, 2
      %p58 = por %p56, %p57
      %p59 = scmp.ne.s32.totalorder %s48, %s49
      %p60 = scmp.eq.s32.totalorder %s14, 0
      %p61 = por %p59, %p60
      %p62 = scmp.ne.s32.totalorder %s48, %s49
      %p63 = scmp.eq.s32.totalorder %s15, 2
      %p64 = por %p62, %p63
      %p66 = scmp.ne.s32.totalorder %s49, %s65
      %p67 = scmp.eq.s32.totalorder %s15, 0
      %p68 = por %p66, %p67
      %s70 = sadd.s32 %s69, 1
      %p73 = scmp.eq.s32.totalorder %s9, 2
      %p74 = scmp.ne.s32.totalorder %s69, %s71
      %p75 = scmp.eq.s32.totalorder %s9, 0
      %p76 = por %p74, %p75
      %p77 = scmp.ne.s32.totalorder %s69, %s71
      %p78 = scmp.eq.s32.totalorder %s14, 2
      %p79 = por %p77, %p78
      %p80 = scmp.ne.s32.totalorder %s71, %s72
      %p81 = scmp.eq.s32.totalorder %s14, 0
      %p82 = por %p80, %p81
      %p83 = scmp.ne.s32.totalorder %s71, %s72
      %p84 = scmp.eq.s32.totalorder %s15, 2
      %p85 = por %p83, %p84
      %p87 = scmp.ne.s32.totalorder %s72, %s86
      %p88 = scmp.eq.s32.totalorder %s15, 0
      %p89 = por %p87, %p88
      %p90 = scmp.le.s32.totalorder 1, %s9
      %p91 = scmp.lt.s32.totalorder %s9, 4
      %p92 = pnand %p90, %p91
      %p93 = pneg %p92
      // Predicated region
      $region9: #{tpu_custom_call.1} parent=5 // pred_check
        _
      $region10: #{tpu_custom_call.1} parent=5 // pred_check_branch
        %95 = sbr.rel (%p92) target = $region12
      $region11: #{tpu_custom_call.1} parent=5 // pred_region
        %s96 = ssub.s32 %s9, 1
      $region12: #{tpu_custom_call.1} parent=5 // pred_fallthru
        _
      %p97 = scmp.lt.s32.totalorder %s9, 3
      // Predicated region
      $region13: #{tpu_custom_call.1} parent=5 // pred_check
        %p98 = pneg %p97
      $region14: #{tpu_custom_call.1} parent=5 // pred_check_branch
        %100 = sbr.rel (%p98) target = $region16
      $region15: #{tpu_custom_call.1} parent=5 // pred_region
        // Predicated region
        $region17: #{tpu_custom_call.1} parent=15 // pred_check
          %p101 = pneg %p29
        $region18: #{tpu_custom_call.1} parent=15 // pred_check_branch
          %103 = sbr.rel (%p101) target = $region20
        $region19: #{tpu_custom_call.1} parent=15 // pred_region
          %p104 = scmp.lt.s32.totalorder %s9, 2
          %s105 = scalar_select %p104, %s9, 2
          %s106 = smul.addr %s105, 8
          %s107 = scalar_lea.vmem %s0, %s106
        $region20: #{tpu_custom_call.1} parent=15 // pred_fallthru
          _
        // Predicated region
        $region21: #{tpu_custom_call.1} parent=15 // pred_check
          %p108 = pneg %p55
        $region22: #{tpu_custom_call.1} parent=15 // pred_check_branch
          %110 = sbr.rel (%p108) target = $region24
        $region23: #{tpu_custom_call.1} parent=15 // pred_region
          %p111 = scmp.lt.s32.totalorder %s9, 2
          %s112 = scalar_select %p111, %s9, 2
          %s113 = smul.addr %s112, 8
          %s114 = scalar_lea.vmem %s1, %s113
        $region24: #{tpu_custom_call.1} parent=15 // pred_fallthru
          _
      $region16: #{tpu_custom_call.1} parent=5 // pred_fallthru
        _
      %p115 = scmp.le.s32.totalorder 1, %s9
      %p116 = scmp.lt.s32.totalorder %s9, 4
      %p117 = pnand %p115, %p116
      %p118 = pneg %p117
      // Predicated region
      $region25: #{tpu_custom_call.1} parent=5 // pred_check
        _
      $region26: #{tpu_custom_call.1} parent=5 // pred_check_branch
        %120 = sbr.rel (%p117) target = $region28
      $region27: #{tpu_custom_call.1} parent=5 // pred_region
        %s121 = ssub.s32 %s9, 1
        %p122 = scmp.lt.s32.totalorder %s14, 2
        %s123 = scalar_select %p122, %s14, 2
        %s124 = smul.addr %s123, 8
        %s125 = scalar_lea.vmem %s0, %s124
        %p126 = pneg %p35
        %p127 = pneg %p32
        %p128 = scmp.lt.s32.totalorder %s14, 2
        %s129 = scalar_select %p128, %s14, 2
        %s130 = smul.addr %s129, 8
        %s131 = scalar_lea.vmem %s1, %s130
        %p132 = pneg %p61
        %p133 = pneg %p58
        %p134 = pneg %p82
        %p135 = pneg %p79
        %p136 = scmp.lt.s32.totalorder %s14, 2
        %s137 = scalar_select %p136, %s14, 2
        %s138 = smul.addr %s137, 8
        %s139 = scalar_lea.vmem %s0, %s138
        %p140 = scmp.lt.s32.totalorder %s14, 2
        %s141 = scalar_select %p140, %s14, 2
        %s142 = smul.addr %s141, 8
        %s143 = scalar_lea.vmem %s1, %s142
        %p144 = scmp.eq.s32.totalorder %s14, 0
        // Predicated region
        $region29: #{tpu_custom_call.1} parent=27 // pred_check
          %p145 = pneg %p144
        $region30: #{tpu_custom_call.1} parent=27 // pred_check_branch
          %147 = sbr.rel (%p145) target = $region32
        $region31: #{tpu_custom_call.1} parent=27 // pred_region
          %vm148 = vcmask 0
          %149 = vst.msk [vmem:[#allocation2] sm:$0x1] %vm148, 0.0
        $region32: #{tpu_custom_call.1} parent=27 // pred_fallthru
          _
        %v150 = vld [vmem:[%s139] sm:$0xff]
        %v151 = vld [vmem:[%s143] sm:$0xff]
        %s152 = smul.u32 %s14, 8
        %v153 = vlaneseq
        %v154 = vshrl.u32 %v153, 7
        %v155 = vstv %s152
        %v156 = vadd.s32 %v155, %v154
        %vm157 = vcmp.lt.s32.totalorder %v156, 20
        %v158 = vsel %vm157, 1, 0
        %vm159 = vcmp.eq.s32.totalorder %v158, 1
        %v160 = vsel %vm159, %v150, 0.0
        %v161 = vlaneseq
        %v162 = vand.u32 %v161, 127
        %163 = vset.pattern.permute.xlu0 0
        %164 = vperm.xlu0 %163, %v151
        %v165 = vpop.permute.xlu0 %164
        %vm166 = vcmp.eq.s32.totalorder %v162, %v165
        %v167 = vsel %vm166, %v160, 0.0
        %vm168 = vcmask 130048
        %v169 = vsel %vm168, %v167, 0.0
        %170 = vadd.xlane.f32.xlu0 %v169
        %v171 = vpop.xlane.xlu0 %170
        %v172 = vsub.f32 0.0, %v160
        %v173 = vsel %vm168, %v172, -inf
        %174 = vmax.xlane.f32.xlu0 %v173
        %v175 = vpop.xlane.xlu0 %174
        %v176 = vmax.f32 %v175, -0.3
        %v177 = vsub.f32 %v172, %v176
        %v178 = vmul.f32 %v177, 1.442695
        %v179 = vpow.pop %v178
        %v180 = vsel %vm168, %v179, 0.0
        %181 = vadd.xlane.f32.xlu0 %v180
        %v182 = vpop.xlane.xlu0 %181
        %v183 = vsub.f32 -0.3, %v176
        %v184 = vmul.f32 %v183, 1.442695
        %v185 = vpow.pop %v184
        %v186 = vadd.f32 %v185, %v182
        %v187 = vlog2.pop %v186
        %v188 = vmul.f32 %v187, 0.6931472
        %v189 = vadd.f32 %v176, %v188
        %v190 = vadd.f32 %v171, %v189
        %v191 = vsel %vm157, %v190, 0.0
        %v192 = vld [vmem:[#allocation2] sm:$0x1]
        %v193 = vrot.slane %v191, 4
        %v194 = vadd.f32 %v191, %v193
        %v195 = vrot.slane %v194, 2
        %v196 = vadd.f32 %v194, %v195
        %v197 = vrot.slane %v196, 1
        %v198 = vadd.f32 %v196, %v197
        %v199 = vadd.f32 %v192, %v198
        %vm200 = vcmask 0
        %201 = vst.msk [vmem:[#allocation2] sm:$0x1] %vm200, %v199
        %p202 = scmp.eq.s32.totalorder %s14, 2
        // Predicated region
        $region33: #{tpu_custom_call.1} parent=27 // pred_check
          %p203 = pneg %p202
        $region34: #{tpu_custom_call.1} parent=27 // pred_check_branch
          %205 = sbr.rel (%p203) target = $region36
        $region35: #{tpu_custom_call.1} parent=27 // pred_region
          %v206 = vld [vmem:[#allocation2] sm:$0x1]
          %v207 = vmul.f32 %v206, 0.05
          %208 = vst.msk [vmem:[#allocation3] sm:$0x1] %vm200, %v207
        $region36: #{tpu_custom_call.1} parent=27 // pred_fallthru
          _
        // Predicated region
        $region37: #{tpu_custom_call.1} parent=27 // pred_check
          %p209 = pneg %p79
        $region38: #{tpu_custom_call.1} parent=27 // pred_check_branch
          %211 = sbr.rel (%p209) target = $region40
        $region39: #{tpu_custom_call.1} parent=27 // pred_region
          %213 = vsyncadd [#allocation4], 0
          %s215 = sshll.u32 [#allocation3], 4
          %s216 = int_to_ptr.vmem [resolvable:$true] %s215
          %s217 = sshll.u32 %s2, 4
          %s218 = int_to_ptr.hbm [resolvable:$true] %s217
          %220 = dma.vmem_to_hbm [thread:$0]  %s216, 16, %s218, [#allocation4]
        $region40: #{tpu_custom_call.1} parent=27 // pred_fallthru
          _
        // Predicated region
        $region41: #{tpu_custom_call.1} parent=27 // pred_check
          %p221 = pneg %p79
        $region42: #{tpu_custom_call.1} parent=27 // pred_check_branch
          %223 = sbr.rel (%p221) target = $region44
        $region43: #{tpu_custom_call.1} parent=27 // pred_region
          %225 = dma.done [#allocation4], 16
        $region44: #{tpu_custom_call.1} parent=27 // pred_fallthru
          _
      $region28: #{tpu_custom_call.1} parent=5 // pred_fallthru
        _
      %p226 = scmp.le.s32.totalorder 2, %s9
      // Predicated region
      $region45: #{tpu_custom_call.1} parent=5 // pred_check
        %p227 = pneg %p226
      $region46: #{tpu_custom_call.1} parent=5 // pred_check_branch
        %229 = sbr.rel (%p227) target = $region48
      $region47: #{tpu_custom_call.1} parent=5 // pred_region
        %s230 = ssub.s32 %s9, 2
      $region48: #{tpu_custom_call.1} parent=5 // pred_fallthru
        _
    $region6: #{tpu_custom_call.1} parent=1 // loop_footer
      %s13 = sadd.s32 1, %s9
    $region7: #{tpu_custom_call.1} parent=1 // loop_footer_branch
      %8 = sbr.rel target = $region3
    $region8: #{tpu_custom_call.1} parent=1 // loop_exit
      _
    %231 = vsyncpa [#allocation4], 1
    %s232 = scalar_lea.sflag [#allocation4], 1
    %233 = vsyncpa %s232, 1

</llo_original>
